<compile_context>
chip_gen: v5e
topology: v5e:2x2
jax: 0.10.0
libtpu: 0.0.40
codegen_flags: <defaults>
</compile_context>

<pallas_src>
import functools
import numpy as np
import jax
import jax.numpy as jnp
from jax.experimental import pallas as pl
from jax.experimental.pallas import tpu as pltpu

CQ_PAD = 384  # 313 quantized-ab bins padded to a lane-dense multiple of 128


def _round_up(x, m):
    return ((x + m - 1) // m) * m


def _hw_config():
    """Generation-aware VMEM budget / tile preferences (conservative fallback = v7x)."""
    kind = ""
    try:
        kind = jax.devices()[0].device_kind.lower()
    except Exception:
        pass
    vmem_cap = None
    try:
        vmem_cap = int(pltpu.get_tpu_info().vmem_capacity_bytes)
    except Exception:
        vmem_cap = None
    if vmem_cap is None:
        vmem_cap = 128 * 1024 * 1024 if ("v5" in kind or "v6" in kind) else 64 * 1024 * 1024
    if vmem_cap >= 100 * 1024 * 1024:            # v5e / v6e: 128 MiB physical VMEM
        vmem_limit, budget = 64 * 1024 * 1024, 44 * 1024 * 1024
    else:                                        # v7x (64 MiB) or unknown: stay conservative
        vmem_limit, budget = 40 * 1024 * 1024, 26 * 1024 * 1024
    return dict(
        vmem_limit=vmem_limit,
        budget=budget,
        prefer_tn=128 if "v5" in kind else 256,  # v5e MXU is 4x 128x128; 256 buys nothing
        two_core=("v7" in kind) or ("7x" in kind),
        exp_bf16="v5" not in kind,               # bf16 EUP exp only on v6e / v7x
    )


_HW = _hw_config()


# --------------------------------------------------------------------------
# Pallas kernel 1: fused matmul + bias + ReLU + (folded eval-mode BatchNorm)
# --------------------------------------------------------------------------
def _matmul_fused_kernel(a_ref, w_ref, bss_ref, o_ref, acc_ref, *, relu, has_bn):
    @pl.when(pl.program_id(2) == 0)
    def _():
        acc_ref[...] = jnp.zeros_like(acc_ref)

    acc_ref[...] += jnp.dot(a_ref[...], w_ref[...],
                            preferred_element_type=jnp.float32)

    @pl.when(pl.program_id(2) == pl.num_programs(2) - 1)
    def _():
        acc = acc_ref[...] + bss_ref[0:1, :]          # bias
        if relu:
            acc = jnp.maximum(acc, 0.0)
        if has_bn:
            acc = acc * bss_ref[1:2, :] + bss_ref[2:3, :]
        o_ref[...] = acc.astype(o_ref.dtype)


def _pick_tiles(M, Kp, Np, out_bytes, bss_rows):
    """Pick (tm, tn, tk, Mp): padded-M plus VMEM-aware tiles (all dims padded to 128)."""
    budget = _HW["budget"]
    tn = 256 if (Np % 256 == 0 and _HW["prefer_tn"] == 256) else 128

    if M < 128:
        Mp = _round_up(max(M, 8), 8)
        tm_cands = [Mp]
    else:
        Mp = _round_up(M, 128)
        tm_cands = [d for d in range(min(Mp, 1024), 0, -128) if Mp % d == 0]
    tk_cands = [d for d in range(min(Kp, 2048), 0, -128) if Kp % d == 0]

    tm, tk = tm_cands[-1], tk_cands[-1]
    found = False
    for cm in tm_cands:                       # prefer big M tiles, then big K tiles
        for ck in tk_cands:
            need = (2 * cm * ck * 2           # A tile, bf16, double-buffered
                    + 2 * ck * tn * 2         # W tile, bf16, double-buffered
                    + 2 * cm * tn * out_bytes  # output tile, double-buffered
                    + cm * tn * 4             # f32 accumulator scratch
                    + 2 * bss_rows * tn * 4)  # bias/scale/shift
            if need <= budget:
                tm, tk, found = cm, ck, True
                break
        if found:
            break

    # v7x: make sure both TensorCores get a parallel tile when the shape allows it.
    if _HW["two_core"] and (Mp // tm) * (Np // tn) < 2:
        if tn == 256:
            tn = 128
        elif tm >= 256:
            tm //= 2
    return tm, tn, tk, Mp


def matmul_fused(a, w, b=None, scale=None, shift=None, *, relu=False,
                 out_dtype=jnp.bfloat16):
    """out = maybe_relu(a @ w + b) [* scale + shift]   (bf16 MXU, f32 accumulate).

    M / K / N are padded to hardware-friendly multiples internally and the result is
    sliced back to (M, N)."""
    M, K = a.shape
    K2, N = w.shape
    assert K == K2
    has_bn = scale is not None
    Kp = _round_up(K, 128)
    Np = _round_up(N, 128)
    bss_rows = 3 if has_bn else 1
    tm, tn, tk, Mp = _pick_tiles(M, Kp, Np, jnp.dtype(out_dtype).itemsize, bss_rows)

    a = a.astype(jnp.bfloat16)
    if (Mp, Kp) != (M, K):
        a = jnp.pad(a, ((0, Mp - M), (0, Kp - K)))
    w = w.astype(jnp.bfloat16)
    if (Kp, Np) != (K, N):
        w = jnp.pad(w, ((0, Kp - K), (0, Np - N)))

    b = jnp.zeros((N,), jnp.float32) if b is None else b.astype(jnp.float32)
    rows = [jnp.pad(b, (0, Np - N))]
    if has_bn:
        rows.append(jnp.pad(scale.astype(jnp.float32), (0, Np - N), constant_values=1.0))
        rows.append(jnp.pad(shift.astype(jnp.float32), (0, Np - N)))
    bss = jnp.stack(rows, axis=0)             # (1 or 3, Np)

    grid = (Mp // tm, Np // tn, Kp // tk)
    kernel = functools.partial(_matmul_fused_kernel, relu=relu, has_bn=has_bn)
    out = pl.pallas_call(
        kernel,
        out_shape=jax.ShapeDtypeStruct((Mp, Np), out_dtype),
        grid_spec=pltpu.PrefetchScalarGridSpec(
            num_scalar_prefetch=0,
            grid=grid,
            in_specs=[
                pl.BlockSpec((tm, tk), lambda i, j, k: (i, k)),     # activations / patches
                pl.BlockSpec((tk, tn), lambda i, j, k: (k, j)),     # weights
                pl.BlockSpec((bss_rows, tn), lambda i, j, k: (0, j)),
            ],
            out_specs=pl.BlockSpec((tm, tn), lambda i, j, k: (i, j)),
            scratch_shapes=[pltpu.VMEM((tm, tn), jnp.float32)],     # f32 accumulator
        ),
        compiler_params=pltpu.CompilerParams(
            dimension_semantics=("parallel", "parallel", "arbitrary"),
            vmem_limit_bytes=_HW["vmem_limit"],
        ),
    )(a, w, bss)
    if (Mp, Np) != (M, N):
        out = out[:M, :N]
    return out


# --------------------------------------------------------------------------
# Pallas kernel 2: fused softmax(dim=channels) + 1x1 model_out projection
# --------------------------------------------------------------------------
def _softmax_proj_kernel(x_ref, w_ref, o_ref, *, n_valid, exp_bf16):
    x = x_ref[...].astype(jnp.float32)
    lane = jax.lax.broadcasted_iota(jnp.int32, x.shape, dimension=1)
    x = jnp.where(lane < n_valid, x, -1e30)           # mask padded quantized-ab lanes
    m = jnp.max(x, axis=-1, keepdims=True)
    z = x - m
    if exp_bf16:                                       # v6e / v7x: bf16 EUP exp
        p = jnp.exp(z.astype(jnp.bfloat16))
        denom = jnp.sum(p.astype(jnp.float32), axis=-1, keepdims=True)
    else:                                              # v5e: f32 exp
        e = jnp.exp(z)
        denom = jnp.sum(e, axis=-1, keepdims=True)
        p = e.astype(jnp.bfloat16)
    # model_out is linear, so it commutes with the per-pixel normalization.
    y = jnp.dot(p, w_ref[...], preferred_element_type=jnp.float32)
    o_ref[...] = y * pl.reciprocal(denom, approx=True)


def softmax_project(x, w, n_valid):
    """x: (M, Cq) logits (Cq lane-padded); w: (Cq, n_out).  Lane-dense output."""
    M, Cq = x.shape
    n_out = w.shape[1]
    Np = _round_up(n_out, 128)
    if M < 128:
        Mp = _round_up(max(M, 8), 8)
        tm = Mp
    else:
        Mp = _round_up(M, 128)
        tm = next(d for d in range(min(Mp, 512), 0, -128) if Mp % d == 0)

    xp = x.astype(jnp.bfloat16)
    if Mp != M:
        xp = jnp.pad(xp, ((0, Mp - M), (0, 0)))
    wp = jnp.pad(w.astype(jnp.bfloat16), ((0, 0), (0, Np - n_out)))

    kernel = functools.partial(_softmax_proj_kernel, n_valid=n_valid,
                               exp_bf16=_HW["exp_bf16"])
    out = pl.pallas_call(
        kernel,
        out_shape=jax.ShapeDtypeStruct((Mp, Np), jnp.float32),
        grid_spec=pltpu.PrefetchScalarGridSpec(
            num_scalar_prefetch=0,
            grid=(Mp // tm,),
            in_specs=[
                pl.BlockSpec((tm, Cq), lambda i: (i, 0)),
                pl.BlockSpec((Cq, Np), lambda i: (0, 0)),
            ],
            out_specs=pl.BlockSpec((tm, Np), lambda i: (i, 0)),
        ),
        compiler_params=pltpu.CompilerParams(
            dimension_semantics=("parallel",),
            vmem_limit_bytes=_HW["vmem_limit"],
        ),
    )(xp, wp)
    return out[:M, :n_out]


# --------------------------------------------------------------------------
# Glue: im2col, conv / fused sub-pixel conv-transpose wrappers, bilinear upsample
# --------------------------------------------------------------------------
def im2col_nhwc(x, kh, kw, stride, padding, dilation):
    N, H, W, C = x.shape
    xp = jnp.pad(x, ((0, 0), (padding, padding), (padding, padding), (0, 0)))
    Ho = (H + 2 * padding - dilation * (kh - 1) - 1) // stride + 1
    Wo = (W + 2 * padding - dilation * (kw - 1) - 1) // stride + 1
    cols = []
    for i in range(kh):
        for j in range(kw):
            r0, c0 = i * dilation, j * dilation
            sl = xp[:, r0:r0 + stride * (Ho - 1) + 1:stride,
                       c0:c0 + stride * (Wo - 1) + 1:stride, :]
            cols.append(sl)
    patches = jnp.concatenate(cols, axis=-1)           # (N, Ho, Wo, kh*kw*C)
    return patches.reshape(N * Ho * Wo, kh * kw * C), (N, Ho, Wo)


def conv2d(x, w, b, *, stride=1, padding=0, dilation=1, relu=False, bn=None,
           out_dtype=jnp.bfloat16):
    """x: NHWC (bf16); w: PyTorch (O, I, kh, kw); eval-mode BN folded after ReLU."""
    O, I, kh, kw = w.shape
    a, (N, Ho, Wo) = im2col_nhwc(x, kh, kw, stride, padding, dilation)
    wm = jnp.transpose(w, (2, 3, 1, 0)).reshape(kh * kw * I, O)
    scale = shift = None
    if bn is not None:
        gamma, beta, mean, var = bn
        scale = gamma / jnp.sqrt(var + 1e-5)
        shift = beta - mean * scale
    y = matmul_fused(a, wm, b, scale, shift, relu=relu, out_dtype=out_dtype)
    return y.reshape(N, Ho, Wo, O)


def conv_transpose2d(x, w, b, *, stride=2, padding=1, relu=False):
    """ConvTranspose2d(k=4, s=2, p=1) via sub-pixel decomposition, fused into ONE Pallas
    matmul: a shared 3x3 patch matrix (input zero-padded by 1) against the four 2x2
    phase kernels embedded in a single (9*I, 4*O) weight, then a pixel-shuffle reshape.
    x: NHWC; w: PyTorch ConvTranspose2d layout (I, O, kh, kw)."""
    I, O, kh, kw = w.shape
    assert stride == 2 and padding == 1 and kh == 4 and kw == 4
    N, H, W, C = x.shape
    assert C == I
    a, _ = im2col_nhwc(x, 3, 3, 1, 1, 1)                 # (N*H*W, 9*I)

    # Output pixel (2h + r, 2w + c) = sum over 2x2 window offsets (dy, dx) of
    #   x_padded[h + r + dy, w + c + dx] * W[:, :, ky_map[r][dy], ky_map[c][dx]]
    ky_map = ((3, 1), (2, 0))
    w_big = jnp.zeros((9 * I, 4 * O), jnp.float32)
    for phase, (r, c) in enumerate(((0, 0), (0, 1), (1, 0), (1, 1))):
        for dy in (0, 1):
            for dx in (0, 1):
                tap = (r + dy) * 3 + (c + dx)
                blk = w[:, :, ky_map[r][dy], ky_map[c][dx]]   # (I, O)
                w_big = w_big.at[tap * I:(tap + 1) * I,
                                 phase * O:(phase + 1) * O].set(blk)
    b_big = jnp.tile(b.astype(jnp.float32), 4)

    y = matmul_fused(a, w_big, b_big, relu=relu)         # (N*H*W, 4*O)
    y = y.reshape(N, H, W, 2, 2, O)                      # (..., r, c, O)
    y = jnp.transpose(y, (0, 1, 3, 2, 4, 5))             # (N, H, r, W, c, O)
    return y.reshape(N, 2 * H, 2 * W, O)


def _conv_transpose_reference(x_nhwc, w, b, *, relu):
    """Plain-JAX PyTorch-semantics ConvTranspose2d(k=4, s=2, p=1) used for self-checking."""
    kh = w.shape[2]
    w_hwio = jnp.transpose(w[:, :, ::-1, ::-1], (2, 3, 0, 1))    # (kh, kw, I, O)
    y = jax.lax.conv_general_dilated(
        x_nhwc.astype(jnp.float32), w_hwio.astype(jnp.float32),
        window_strides=(1, 1),
        padding=((kh - 2, kh - 2), (kh - 2, kh - 2)),
        lhs_dilation=(2, 2),
        dimension_numbers=("NHWC", "HWIO", "NHWC"),
        precision=jax.lax.Precision.HIGHEST)
    y = y + b.astype(jnp.float32)
    return jnp.maximum(y, 0.0) if relu else y


def upsample4_bilinear(x_nchw, scale_out=1.0):
    """nn.Upsample(scale_factor=4, mode='bilinear', align_corners=False) as a tiny
    separable fixed-phase stencil; NCHW so W maps to the 128-lane axis."""
    def up_axis(v, axis):
        n = v.shape[axis]
        idx = jnp.arange(n)
        left = jnp.take(v, jnp.maximum(idx - 1, 0), axis=axis)
        right = jnp.take(v, jnp.minimum(idx + 1, n - 1), axis=axis)
        p0 = 0.375 * left + 0.625 * v
        p1 = 0.125 * left + 0.875 * v
        p2 = 0.875 * v + 0.125 * right
        p3 = 0.625 * v + 0.375 * right
        stacked = jnp.stack([p0, p1, p2, p3], axis=axis + 1)
        new_shape = list(v.shape)
        new_shape[axis] = 4 * n
        return stacked.reshape(new_shape)
    y = up_axis(x_nchw.astype(jnp.float32), 2)
    y = up_axis(y, 3)
    return y * scale_out


# --------------------------------------------------------------------------
# Deterministic synthetic parameters (same shapes as eccv16 / ECCVGenerator)
# --------------------------------------------------------------------------
_rng = np.random.default_rng(0)


def _conv_wb(ci, co, k):
    w = _rng.normal(0.0, np.sqrt(2.0 / (ci * k * k)), size=(co, ci, k, k)).astype(np.float32)
    b = _rng.normal(0.0, 0.01, size=(co,)).astype(np.float32)
    return jnp.asarray(w), jnp.asarray(b)


def _bn_params(c):
    gamma = (1.0 + 0.05 * _rng.standard_normal(c)).astype(np.float32)
    beta = (0.05 * _rng.standard_normal(c)).astype(np.float32)
    mean = (0.05 * _rng.standard_normal(c)).astype(np.float32)
    var = np.abs(1.0 + 0.05 * _rng.standard_normal(c)).astype(np.float32)
    return tuple(jnp.asarray(v) for v in (gamma, beta, mean, var))


def make_params():
    enc, dec = [], []

    def C(lst, ci, co, k=3, s=1, p=1, d=1, relu=True, bn=False):
        w, b = _conv_wb(ci, co, k)
        lst.append(dict(kind="conv", w=w, b=b, s=s, p=p, d=d, relu=relu,
                        bn=_bn_params(co) if bn else None))

    def CT(lst, ci, co, k=4, s=2, p=1, relu=True):
        w = jnp.asarray(_rng.normal(0.0, np.sqrt(2.0 / (ci * k * k)),
                                    size=(ci, co, k, k)).astype(np.float32))
        b = jnp.asarray(_rng.normal(0.0, 0.01, size=(co,)).astype(np.float32))
        lst.append(dict(kind="convT", w=w, b=b, s=s, p=p, relu=relu))

    # ---- encoder (model1 .. model4, "cuda:0" half) ----
    C(enc, 1, 64); C(enc, 64, 64, s=2, bn=True)                                  # model1
    C(enc, 64, 128); C(enc, 128, 128, s=2, bn=True)                              # model2
    C(enc, 128, 256); C(enc, 256, 256); C(enc, 256, 256, s=2, bn=True)           # model3
    C(enc, 256, 512); C(enc, 512, 512); C(enc, 512, 512, bn=True)                # model4
    # ---- decoder (model5 .. model8 + head, "cuda:1" half) ----
    for _ in range(2):                                                            # model5, model6
        C(dec, 512, 512, p=2, d=2); C(dec, 512, 512, p=2, d=2)
        C(dec, 512, 512, p=2, d=2, bn=True)
    C(dec, 512, 512); C(dec, 512, 512); C(dec, 512, 512, bn=True)                # model7
    CT(dec, 512, 256)                                                             # model8 ConvT+ReLU
    C(dec, 256, 256, relu=False)   # two consecutive convs, no ReLU between (matches spec)
    C(dec, 256, 256)
    C(dec, 256, 256)
    # conv8_3: 1x1, 256 -> 313, no ReLU.  Zero-padded to 384 output lanes (lane-dense
    # stores); padded lanes are masked explicitly inside the softmax kernel.
    w313, b313 = _conv_wb(256, 313, 1)
    w_pad = jnp.zeros((CQ_PAD, 256, 1, 1), jnp.float32).at[:313].set(w313)
    b_pad = jnp.zeros((CQ_PAD,), jnp.float32).at[:313].set(b313)
    dec.append(dict(kind="conv", w=w_pad, b=b_pad, s=1, p=0, d=1, relu=False, bn=None))
    # model_out: 1x1, 313 -> 2, bias=False; stored as a (384, 2) matrix, zero pad rows.
    w_out = _rng.normal(0.0, np.sqrt(2.0 / 313), size=(2, 313)).astype(np.float32)
    w_out_mat = jnp.zeros((CQ_PAD, 2), jnp.float32).at[:313, :].set(jnp.asarray(w_out).T)
    return enc, dec, w_out_mat


def _run_ops(x, ops):
    for op in ops:
        if op["kind"] == "conv":
            x = conv2d(x, op["w"], op["b"], stride=op["s"], padding=op["p"],
                       dilation=op["d"], relu=op["relu"], bn=op["bn"])
        else:
            x = conv_transpose2d(x, op["w"], op["b"], stride=op["s"],
                                 padding=op["p"], relu=op["relu"])
    return x


def model_parallel_colorization_forward(x_nchw, enc_ops, dec_ops, w_out_mat):
    """Full ModelParallelColorization forward (encoder -> decoder) on TPU."""
    x = (x_nchw.astype(jnp.float32) - 50.0) / 100.0            # BaseColor.normalize_l
    x = jnp.transpose(x, (0, 2, 3, 1)).astype(jnp.bfloat16)    # NCHW -> NHWC, bf16 activations
    x = _run_ops(x, enc_ops)                                   # encoder half (model1..4)
    x = _run_ops(x, dec_ops)                                   # decoder half (model5..8 -> conv8_3)
    N, H, W, Cq = x.shape                                      # Cq == 384 (313 + pad)
    out = softmax_project(x.reshape(N * H * W, Cq), w_out_mat, n_valid=313)
    out = out.reshape(N, H, W, 2)
    out = jnp.transpose(out, (0, 3, 1, 2))                     # NHWC -> NCHW
    out = upsample4_bilinear(out, 110.0)                       # upsample4 + unnormalize_ab
    return out


# --------------------------------------------------------------------------
if __name__ == "__main__":
    key = jax.random.PRNGKey(0)
    k1, k2, k3, k4 = jax.random.split(key, 4)

    # --- numerical self-check of the fused sub-pixel ConvTranspose2d decomposition ---
    xi = jax.random.normal(k1, (1, 4, 4, 8), jnp.float32).astype(jnp.bfloat16)
    wt = (jax.random.normal(k2, (8, 8, 4, 4), jnp.float32) * np.sqrt(2.0 / (8 * 16)))
    wt = wt.astype(jnp.bfloat16).astype(jnp.float32)       # bf16-representable weights
    bt = jax.random.normal(k3, (8,), jnp.float32) * 0.01
    got = jax.block_until_ready(conv_transpose2d(xi, wt, bt, relu=True)).astype(jnp.float32)
    ref = _conv_transpose_reference(xi.astype(jnp.float32), wt, bt, relu=True)
    err = float(jnp.max(jnp.abs(got - ref)))
    mag = float(jnp.max(jnp.abs(ref))) + 1e-6
    assert err <= 0.05 * max(1.0, mag), (err, mag)

    # --- full forward pass ---
    # L-channel input, NCHW like PyTorch: batch=1, 1 channel, 32x32 (divisible by 8)
    x = jax.random.uniform(k4, (1, 1, 32, 32), jnp.float32, 0.0, 100.0)
    enc_ops, dec_ops, w_out_mat = make_params()
    fwd = jax.jit(lambda inp: model_parallel_colorization_forward(
        inp, enc_ops, dec_ops, w_out_mat))
    y = jax.block_until_ready(fwd(x))

    assert y.shape == (1, 2, 32, 32), y.shape
    assert bool(jnp.all(jnp.isfinite(y)))
    print("KERNEL_OK")
</pallas_src>

<mosaic_0001>
module attributes {stable_mosaic.version = 11 : i64} {
  func.func @_matmul_fused_kernel(%arg0: i32, %arg1: i32, %arg2: i32, %arg3: memref<16x128xbf16, #tpu.memory_space<vmem>>, %arg4: memref<128x128xbf16, #tpu.memory_space<vmem>>, %arg5: memref<1x128xf32, #tpu.memory_space<vmem>>, %arg6: memref<16x128xbf16, #tpu.memory_space<vmem>>, %arg7: memref<16x128xf32, #tpu.memory_space<vmem>>) attributes {dimension_semantics = [#tpu.dimension_semantics<parallel>, #tpu.dimension_semantics<parallel>, #tpu.dimension_semantics<arbitrary>], iteration_bounds = array<i64: 1, 1, 1>, scalar_prefetch = 0 : i64, scratch_operands = 1 : i64, tpu.core_type = #tpu.core_type<tc>, window_params = [{transform_indices = @transform_0, window_bounds = array<i64: 16, 128>}, {transform_indices = @transform_1, window_bounds = array<i64: 128, 128>}, {transform_indices = @transform_2, window_bounds = array<i64: 1, 128>}, {transform_indices = @transform_3, window_bounds = array<i64: 16, 128>}]} {
    %c0_i32 = arith.constant 0 : i32
    %0 = arith.cmpi eq, %arg2, %c0_i32 : i32
    %1 = arith.extui %0 : i1 to i32
    %c0_i32_0 = arith.constant 0 : i32
    %2 = arith.cmpi ne, %1, %c0_i32_0 : i32
    scf.if %2 {
      %cst_10 = arith.constant 0.000000e+00 : f32
      %12 = vector.broadcast %cst_10 : f32 to vector<16x128xf32>
      %c0_11 = arith.constant 0 : index
      %c0_12 = arith.constant 0 : index
      %13 = vector.load %arg7[%c0_11, %c0_12] : memref<16x128xf32, #tpu.memory_space<vmem>>, vector<16x128xf32>
      tpu.vector_store %arg7[%c0_11, %c0_12], %12 {strides = array<i32>} : memref<16x128xf32, #tpu.memory_space<vmem>>, vector<16x128xf32>,
    } else {
    }
    %c0 = arith.constant 0 : index
    %c0_1 = arith.constant 0 : index
    %3 = vector.load %arg7[%c0, %c0_1] : memref<16x128xf32, #tpu.memory_space<vmem>>, vector<16x128xf32>
    %c0_2 = arith.constant 0 : index
    %c0_3 = arith.constant 0 : index
    %4 = vector.load %arg3[%c0_2, %c0_3] : memref<16x128xbf16, #tpu.memory_space<vmem>>, vector<16x128xbf16>
    %c0_4 = arith.constant 0 : index
    %c0_5 = arith.constant 0 : index
    %5 = vector.load %arg4[%c0_4, %c0_5] : memref<128x128xbf16, #tpu.memory_space<vmem>>, vector<128x128xbf16>
    %cst = arith.constant dense<0.000000e+00> : vector<16x128xf32>
    %6 = tpu.matmul %4, %5, %cst {dimension_numbers = #tpu.dot_dimension_numbers<[1], [0], [0], [1], [0, 0, 1, 1], [], []>} : vector<16x128xbf16>, vector<128x128xbf16>, vector<16x128xf32> -> vector<16x128xf32>
    %7 = arith.addf %3, %6 : vector<16x128xf32>
    %c0_6 = arith.constant 0 : index
    %c0_7 = arith.constant 0 : index
    %8 = vector.load %arg7[%c0_6, %c0_7] : memref<16x128xf32, #tpu.memory_space<vmem>>, vector<16x128xf32>
    tpu.vector_store %arg7[%c0_6, %c0_7], %7 {strides = array<i32>} : memref<16x128xf32, #tpu.memory_space<vmem>>, vector<16x128xf32>,
    %c0_i32_8 = arith.constant 0 : i32
    %9 = arith.cmpi eq, %arg2, %c0_i32_8 : i32
    %10 = arith.extui %9 : i1 to i32
    %c0_i32_9 = arith.constant 0 : i32
    %11 = arith.cmpi ne, %10, %c0_i32_9 : i32
    scf.if %11 {
      %c0_10 = arith.constant 0 : index
      %c0_11 = arith.constant 0 : index
      %12 = vector.load %arg7[%c0_10, %c0_11] : memref<16x128xf32, #tpu.memory_space<vmem>>, vector<16x128xf32>
      %c0_12 = arith.constant 0 : index
      %c0_13 = arith.constant 0 : index
      %13 = vector.load %arg5[%c0_12, %c0_13] : memref<1x128xf32, #tpu.memory_space<vmem>>, vector<1x128xf32>
      %14 = vector.broadcast %13 : vector<1x128xf32> to vector<16x128xf32>
      %15 = arith.addf %12, %14 : vector<16x128xf32>
      %cst_14 = arith.constant 0.000000e+00 : f32
      %16 = vector.broadcast %cst_14 : f32 to vector<16x128xf32>
      %17 = arith.maximumf %15, %16 : vector<16x128xf32>
      %18 = arith.truncf %17 : vector<16x128xf32> to vector<16x128xbf16>
      %c0_15 = arith.constant 0 : index
      %c0_16 = arith.constant 0 : index
      %19 = vector.load %arg6[%c0_15, %c0_16] : memref<16x128xbf16, #tpu.memory_space<vmem>>, vector<16x128xbf16>
      tpu.vector_store %arg6[%c0_15, %c0_16], %18 {strides = array<i32>} : memref<16x128xbf16, #tpu.memory_space<vmem>>, vector<16x128xbf16>,
    } else {
    }
    return
  }
  func.func @transform_0(%arg0: i32, %arg1: i32, %arg2: i32) -> (i32, i32) {
    %c0_i32 = arith.constant 0 : i32
    return %arg0, %arg2 : i32, i32
  }
  func.func @transform_1(%arg0: i32, %arg1: i32, %arg2: i32) -> (i32, i32) {
    %c0_i32 = arith.constant 0 : i32
    return %arg2, %arg1 : i32, i32
  }
  func.func @transform_2(%arg0: i32, %arg1: i32, %arg2: i32) -> (i32, i32) {
    %c0_i32 = arith.constant 0 : i32
    %c0_i32_0 = arith.constant 0 : i32
    return %c0_i32, %arg1 : i32, i32
  }
  func.func @transform_3(%arg0: i32, %arg1: i32, %arg2: i32) -> (i32, i32) {
    %c0_i32 = arith.constant 0 : i32
    return %arg0, %arg1 : i32, i32
  }
}

</mosaic_0001>

<llo_original>
// kernel: tpu_custom_call.1
$region0: #{tpu_custom_call.1}
  #allocation0 [shape = 'u32[]', space=smem, size = 0x4, offset = 0x4, fixed_abs, tag = 'smem constant byte address 0x4 - core index']
  #allocation1 [shape = 'u32[72,128]{1,0:T(1,128)}', space=vmem, size = 0x9000, scoped, tag = 'internal scratch']
  #allocation2 [shape = 'f32[16,128]{1,0:T(8,128)}', space=vmem, size = 0x2000, scoped, tag = 'scratch operand']
  %s0 = inlined_call_operand.hbm [shape: bf16[16,128], index: 0, kind: input, shape index: {}]
  %s1 = inlined_call_operand.hbm [shape: bf16[128,128], index: 1, kind: input, shape index: {}]
  %s2 = inlined_call_operand.vmem [shape: f32[1,128], index: 2, kind: input, shape index: {}]
  %s3 = inlined_call_operand.hbm [shape: bf16[16,128], index: 3, kind: output, shape index: {}]
  %s4 = sld [smem:[#allocation0]]
  $region38: #{tpu_custom_call.1} parent=0
    _
  %s6 = ssub.s32 1, %s4
  %s7 = scalar_select 0, %s6, %s4
  $region1: #{tpu_custom_call.1} parent=0
    #allocation3 [shape = 'u8[4096]{0}', space=vmem, size = 0x1000, scoped, tag = 'input window, operand 0, single buffered']
    #allocation4 [shape = 's32[1]{0}', space=sflag, size = 0x4, scoped, tag = 'scoped memory for tpu_custom_call.1']
    #allocation5 [shape = 's32[1]{0}', space=sflag, size = 0x4, scoped, tag = 'scoped memory for tpu_custom_call.1']
    #allocation6 [shape = 'u8[32768]{0}', space=vmem, size = 0x8000, scoped, tag = 'input window, operand 1, single buffered']
    #allocation7 [shape = 's32[1]{0}', space=sflag, size = 0x4, scoped, tag = 'scoped memory for tpu_custom_call.1']
    #allocation8 [shape = 'u8[4096]{0}', space=vmem, size = 0x1000, scoped, tag = 'output window, operand 0, single buffered']
    %8 = vsyncpa [#allocation4], 0
    %9 = vsyncpa [#allocation7], 0
    %10 = vsyncpa [#allocation5], 0
    // Predicated region
    $region2: #{tpu_custom_call.1} parent=1 // pred_check
      _
    $region3: #{tpu_custom_call.1} parent=1 // pred_check_branch
      %12 = sbr.rel (0) target = $region5
    $region4: #{tpu_custom_call.1} parent=1 // pred_region
      %14 = vsyncadd [#allocation4], 0
      %s15 = sshll.u32 %s0, 4
      %s16 = int_to_ptr.hbm [resolvable:$true] %s15
      %s17 = sshll.u32 [#allocation3], 4
      %s18 = int_to_ptr.vmem [resolvable:$true] %s17
      %23 = dma.hbm_to_vmem [thread:$0]  %s16, 128, %s18, [#allocation4], 64, 64, 4
    $region5: #{tpu_custom_call.1} parent=1 // pred_fallthru
      _
    // Predicated region
    $region6: #{tpu_custom_call.1} parent=1 // pred_check
      _
    $region7: #{tpu_custom_call.1} parent=1 // pred_check_branch
      %25 = sbr.rel (0) target = $region9
    $region8: #{tpu_custom_call.1} parent=1 // pred_region
      %27 = vsyncadd [#allocation7], 0
      %s28 = sshll.u32 %s1, 4
      %s29 = int_to_ptr.hbm [resolvable:$true] %s28
      %s30 = sshll.u32 [#allocation6], 4
      %s31 = int_to_ptr.vmem [resolvable:$true] %s30
      %36 = dma.hbm_to_vmem [thread:$0]  %s29, 1024, %s31, [#allocation7], 64, 64, 4
    $region9: #{tpu_custom_call.1} parent=1 // pred_fallthru
      _
    // Predicated region
    $region10: #{tpu_custom_call.1} parent=1 // pred_check
      _
    $region11: #{tpu_custom_call.1} parent=1 // pred_check_branch
      %38 = sbr.rel (0) target = $region13
    $region12: #{tpu_custom_call.1} parent=1 // pred_region
      _
    $region13: #{tpu_custom_call.1} parent=1 // pred_fallthru
      _
    // Predicated region
    $region14: #{tpu_custom_call.1} parent=1 // pred_check
      _
    $region15: #{tpu_custom_call.1} parent=1 // pred_check_branch
      %40 = sbr.rel (0) target = $region17
    $region16: #{tpu_custom_call.1} parent=1 // pred_region
      %42 = dma.done [#allocation4], 128
    $region17: #{tpu_custom_call.1} parent=1 // pred_fallthru
      _
    // Predicated region
    $region18: #{tpu_custom_call.1} parent=1 // pred_check
      _
    $region19: #{tpu_custom_call.1} parent=1 // pred_check_branch
      %44 = sbr.rel (0) target = $region21
    $region20: #{tpu_custom_call.1} parent=1 // pred_region
      %46 = dma.done [#allocation7], 1024
    $region21: #{tpu_custom_call.1} parent=1 // pred_fallthru
      _
    %p47 = scmp.eq.s32.totalorder 0, 0
    // Predicated region
    $region22: #{tpu_custom_call.1} parent=1 // pred_check
      %p48 = pneg %p47
    $region23: #{tpu_custom_call.1} parent=1 // pred_check_branch
      %50 = sbr.rel (%p48) target = $region25
    $region24: #{tpu_custom_call.1} parent=1 // pred_region
      %51 = vst [vmem:[#allocation2] sm:$0xff] 0.0
      %52 = vst [vmem:[#allocation2 + $0x8] sm:$0xff] 0.0
    $region25: #{tpu_custom_call.1} parent=1 // pred_fallthru
      _
    %v53 = vld [vmem:[#allocation2] sm:$0xff]
    %v54 = vld [vmem:[#allocation2 + $0x8] sm:$0xff]
    %v55 = vld [vmem:[#allocation3] sm:$0xf]
    %v56 = vld [vmem:[#allocation3 + $0x4] sm:$0xf]
    %v57 = vld [vmem:[#allocation6] sm:$0xf]
    %v58 = vld [vmem:[#allocation6 + $0x4] sm:$0xf]
    %v59 = vld [vmem:[#allocation6 + $0x8] sm:$0xf]
    %v60 = vld [vmem:[#allocation6 + $0xc] sm:$0xf]
    %v61 = vld [vmem:[#allocation6 + $0x10] sm:$0xf]
    %v62 = vld [vmem:[#allocation6 + $0x14] sm:$0xf]
    %v63 = vld [vmem:[#allocation6 + $0x18] sm:$0xf]
    %v64 = vld [vmem:[#allocation6 + $0x1c] sm:$0xf]
    %v65 = vld [vmem:[#allocation6 + $0x20] sm:$0xf]
    %v66 = vld [vmem:[#allocation6 + $0x24] sm:$0xf]
    %v67 = vld [vmem:[#allocation6 + $0x28] sm:$0xf]
    %v68 = vld [vmem:[#allocation6 + $0x2c] sm:$0xf]
    %v69 = vld [vmem:[#allocation6 + $0x30] sm:$0xf]
    %v70 = vld [vmem:[#allocation6 + $0x34] sm:$0xf]
    %v71 = vld [vmem:[#allocation6 + $0x38] sm:$0xf]
    %v72 = vld [vmem:[#allocation6 + $0x3c] sm:$0xf]
    %v75 = vunpack.c.l.b16 %v55
    %v76 = vunpack.c.l.b16 %v56
    %v77 = vpack.c.b16 %v76, %v75
    %v95 = vunpack.c.l.b16 %v57
    %v96 = vunpack.c.l.b16 %v58
    %v97 = vunpack.c.l.b16 %v59
    %v98 = vunpack.c.l.b16 %v60
    %v99 = vunpack.c.l.b16 %v61
    %v100 = vunpack.c.l.b16 %v62
    %v101 = vunpack.c.l.b16 %v63
    %v102 = vunpack.c.l.b16 %v64
    %v103 = vunpack.c.l.b16 %v65
    %v104 = vunpack.c.l.b16 %v66
    %v105 = vunpack.c.l.b16 %v67
    %v106 = vunpack.c.l.b16 %v68
    %v107 = vunpack.c.l.b16 %v69
    %v108 = vunpack.c.l.b16 %v70
    %v109 = vunpack.c.l.b16 %v71
    %v110 = vunpack.c.l.b16 %v72
    %v111 = vpack.c.b16 %v96, %v95
    %v112 = vpack.c.b16 %v98, %v97
    %v113 = vpack.c.b16 %v100, %v99
    %v114 = vpack.c.b16 %v102, %v101
    %v115 = vpack.c.b16 %v104, %v103
    %v116 = vpack.c.b16 %v106, %v105
    %v117 = vpack.c.b16 %v108, %v107
    %v118 = vpack.c.b16 %v110, %v109
    %127 = vmatpush.bf16.msra.mxu0 %v118
    %128 = vmatpush.bf16.msra.mxu0 %v117
    %129 = vmatpush.bf16.msra.mxu0 %v116
    %130 = vmatpush.bf16.msra.mxu0 %v115
    %131 = vmatpush.bf16.msra.mxu0 %v114
    %132 = vmatpush.bf16.msra.mxu0 %v113
    %133 = vmatpush.bf16.msra.mxu0 %v112
    %134 = vmatpush.bf16.msra.mxu0 %v111
    %135 = vmatmul.bf16.gmra.mxu0 %v77
    %v136 = vpop.f32.mrf.mxu0
    %v137 = vadd.f32 0.0, %v136
    %v138 = vpop.f32.mrf.mxu0
    %v139 = vadd.f32 0.0, %v138
    %140 = vdwg.mxu0
    %v141 = vadd.f32 %v53, %v137
    %v142 = vadd.f32 %v54, %v139
    %143 = vst [vmem:[#allocation2] sm:$0xff] %v141
    %144 = vst [vmem:[#allocation2 + $0x8] sm:$0xff] %v142
    // Predicated region
    $region26: #{tpu_custom_call.1} parent=1 // pred_check
      %p145 = pneg %p47
    $region27: #{tpu_custom_call.1} parent=1 // pred_check_branch
      %147 = sbr.rel (%p145) target = $region29
    $region28: #{tpu_custom_call.1} parent=1 // pred_region
      %v148 = vld [vmem:[#allocation2] sm:$0xff]
      %v149 = vld [vmem:[#allocation2 + $0x8] sm:$0xff]
      %v150 = vld [vmem:[%s2] sm:$0x1]
      %v152 = vperm.slane %v150, 0
      %v154 = vadd.f32 %v148, %v152
      %v155 = vadd.f32 %v149, %v152
      %v156 = vmax.f32 %v154, 0.0
      %v157 = vmax.f32 %v155, 0.0
      %v158 = vpack.c.bf16 %v156, %v156
      %v159 = vpack.c.bf16 %v157, %v157
      %160 = vst [vmem:[#allocation8] sm:$0xf] %v158
      %161 = vst [vmem:[#allocation8 + $0x4] sm:$0xf] %v159
    $region29: #{tpu_custom_call.1} parent=1 // pred_fallthru
      _
    // Predicated region
    $region30: #{tpu_custom_call.1} parent=1 // pred_check
      _
    $region31: #{tpu_custom_call.1} parent=1 // pred_check_branch
      %163 = sbr.rel (0) target = $region33
    $region32: #{tpu_custom_call.1} parent=1 // pred_region
      %165 = vsyncadd [#allocation5], 0
      %s166 = sshll.u32 [#allocation8], 4
      %s167 = int_to_ptr.vmem [resolvable:$true] %s166
      %s168 = sshll.u32 %s3, 4
      %s169 = int_to_ptr.hbm [resolvable:$true] %s168
      %174 = dma.vmem_to_hbm [thread:$0]  %s167, 128, %s169, [#allocation5], 64, 64, 4
    $region33: #{tpu_custom_call.1} parent=1 // pred_fallthru
      _
    // Predicated region
    $region34: #{tpu_custom_call.1} parent=1 // pred_check
      _
    $region35: #{tpu_custom_call.1} parent=1 // pred_check_branch
      %176 = sbr.rel (0) target = $region37
    $region36: #{tpu_custom_call.1} parent=1 // pred_region
      %178 = dma.done [#allocation5], 128
    $region37: #{tpu_custom_call.1} parent=1 // pred_fallthru
      _
    %179 = vsyncpa [#allocation4], 1
    %180 = vsyncpa [#allocation7], 1
    %181 = vsyncpa [#allocation5], 1

</llo_original>
